<compile_context>
chip_gen: v5e
topology: v5e:2x2
jax: 0.10.0
libtpu: 0.0.40
codegen_flags: <defaults>
</compile_context>

<pallas_src>
import jax
import jax.numpy as jnp
from jax.experimental import pallas as pl
from jax.experimental.pallas import tpu as pltpu

CLASS_NUM = 8
FEAT = 160
IN_CH = FEAT + CLASS_NUM
BN_EPS = 1e-5
MAX_TQ = 2048   # query-tile cap (multiple of 128); 2048x160 f32 = 1.25 MB, fits all gens


# --------------------------------------------------------------------------------------
# Stage 1 (one-shot): f_psi = Sigmoid(BatchNorm1d(Linear([s | one_hot(sl)]))) plus the
# support-side metric precompute:
#   weight          (n_s, FEAT)
#   m2ws = -2*w*s   (n_s, FEAT)
#   c    = sum_d w*s^2   (n_s, 1)
# --------------------------------------------------------------------------------------
def f_psi_kernel(s_ref, cls_ref, wfeat_ref, gb_ref, w_ref, m2ws_ref, c_ref):
    s = s_ref[...]                                                    # (n_s, FEAT) f32
    # Linear feature part on the MXU; the one-hot part is the pre-gathered class row
    # (one_hot(sl) @ W_cls == W_cls[sl]).  Linear bias omitted: exactly cancelled by
    # the batch-mean subtraction of training-mode BatchNorm1d below.
    z = jnp.dot(s, wfeat_ref[...], preferred_element_type=jnp.float32) + cls_ref[...]
    mean = jnp.mean(z, axis=0, keepdims=True)                         # (1, FEAT)
    var = jnp.mean((z - mean) ** 2, axis=0, keepdims=True)            # biased var (PyTorch fwd)
    scale = jax.lax.rsqrt(var + BN_EPS) * gb_ref[0:1, :]              # gamma folded into rsqrt
    z_aff = (z - mean) * scale + gb_ref[1:2, :]
    w = 1.0 / (1.0 + jnp.exp(-z_aff))                                 # exact sigmoid (one-shot, tiny)
    w_ref[...] = w
    m2ws_ref[...] = -2.0 * w * s
    c_ref[...] = jnp.sum(w * (s * s), axis=-1, keepdims=True)


# --------------------------------------------------------------------------------------
# Stage 2 (tiled over queries): weighted euclidean metric, emitted TRANSPOSED (n_s, n_q)
# so queries sit on the lane axis (lane-dense stores).
#   out[j, i] = -sum_d w[j,d]*(q[i,d]-s[j,d])^2
#             = -( w . q^2  +  (-2 w s) . q  +  sum_d w s^2 )
# The contraction A(n_s,K) x B(tq,K) -> (n_s,tq) is the standard q@k^T MXU path
# (same as flash attention); no per-tile XLU transpose of the streamed q tile.
# --------------------------------------------------------------------------------------
def metric_kernel(w_ref, m2ws_ref, c_ref, q_ref, out_ref):
    q = q_ref[...]                                                    # (tq, FEAT)
    dn = (((1,), (1,)), ((), ()))                                     # contract feature dims
    t = jax.lax.dot_general(w_ref[...], q * q, dn,
                            preferred_element_type=jnp.float32)       # (n_s, tq)
    t = t + jax.lax.dot_general(m2ws_ref[...], q, dn,
                                preferred_element_type=jnp.float32)   # (n_s, tq)
    out_ref[...] = -(t + c_ref[...])                                  # rank-1 add of c (n_s,1)


def _choose_tq(n_q):
    """>=2 balanced tiles once n_q is non-trivial (v7x megacore engages), each a
    multiple of 128, capped at MAX_TQ.  Tiny n_q stays a single tile."""
    if n_q <= 256:
        return n_q
    half = pl.cdiv(n_q, 2)
    tq = ((half + 127) // 128) * 128
    return min(tq, MAX_TQ)


def metric_encoder(s, q, sl, params, *, q_stream_dtype=jnp.float32,
                   transposed_output=False):
    """s: (n_s,160) support feats, q: (n_q,160) query feats, sl: (n_s,) int labels.

    q_stream_dtype: jnp.bfloat16 on v6e/v7x halves the dominant q HBM stream and hits
      the native bf16 MXU rate (f32 accumulation; small numeric deviation).
    transposed_output: return the kernel-native (n_s, n_q) layout and skip the
      wrapper-side transpose (extra HBM read+write of the result for large n_q).
    """
    w_lin, b_lin, gamma, beta = params
    del b_lin  # exact no-op: batch-stat BatchNorm subtracts any per-feature constant
    n_s, n_q = s.shape[0], q.shape[0]

    # Glue (XLA): split the Linear weight; one_hot(sl) @ W_cls is a row gather.
    w_feat = w_lin[:FEAT].astype(jnp.float32)                              # (FEAT, FEAT)
    cls_contrib = jnp.take(w_lin[FEAT:], sl, axis=0).astype(jnp.float32)   # (n_s, FEAT)
    gb = jnp.stack([gamma, beta]).astype(jnp.float32)                      # (2, FEAT)

    # ---- stage 1: one-shot support-side precompute (f_psi hoisted out of the grid) ----
    weight, m2ws, c = pl.pallas_call(
        f_psi_kernel,
        out_shape=(
            jax.ShapeDtypeStruct((n_s, FEAT), jnp.float32),
            jax.ShapeDtypeStruct((n_s, FEAT), jnp.float32),
            jax.ShapeDtypeStruct((n_s, 1), jnp.float32),
        ),
    )(s.astype(jnp.float32), cls_contrib, w_feat, gb)

    # ---- stage 2: query-tiled weighted metric ----
    tq = _choose_tq(n_q)
    grid = (pl.cdiv(n_q, tq),)

    score_t = pl.pallas_call(
        metric_kernel,
        out_shape=jax.ShapeDtypeStruct((n_s, n_q), jnp.float32),
        grid=grid,
        in_specs=[
            pl.BlockSpec((n_s, FEAT), lambda i: (0, 0)),   # weight  (resident)
            pl.BlockSpec((n_s, FEAT), lambda i: (0, 0)),   # -2*w*s  (resident)
            pl.BlockSpec((n_s, 1), lambda i: (0, 0)),      # c       (resident)
            pl.BlockSpec((tq, FEAT), lambda i: (i, 0)),    # q tile  (streamed)
        ],
        out_specs=pl.BlockSpec((n_s, tq), lambda i: (0, i)),
        compiler_params=pltpu.CompilerParams(dimension_semantics=("parallel",)),
    )(weight.astype(q_stream_dtype), m2ws.astype(q_stream_dtype), c,
      q.astype(q_stream_dtype))

    # TODO(synk): at few-shot sizes the forward is launch/DMA-overhead bound; batching
    # episodes onto a leading 'parallel' grid axis is the next structural win.
    return score_t if transposed_output else score_t.T                # contract: (n_q, n_s)


def init_params(key):
    # Deterministic init mirroring PyTorch defaults:
    #   Linear: U(-1/sqrt(fan_in), 1/sqrt(fan_in));  BatchNorm1d: gamma=1, beta=0.
    kw, kb = jax.random.split(key)
    bound = 1.0 / jnp.sqrt(jnp.float32(IN_CH))
    w_lin = jax.random.uniform(kw, (IN_CH, FEAT), jnp.float32, -bound, bound)
    b_lin = jax.random.uniform(kb, (FEAT,), jnp.float32, -bound, bound)
    gamma = jnp.ones((FEAT,), jnp.float32)
    beta = jnp.zeros((FEAT,), jnp.float32)
    return w_lin, b_lin, gamma, beta


if __name__ == "__main__":
    key = jax.random.PRNGKey(0)
    k_s, k_q, k_p = jax.random.split(key, 3)

    n_s, n_q = 8, 16                                    # 8 supports (one per class), 16 queries
    s = jax.random.normal(k_s, (n_s, FEAT), jnp.float32)
    q = jax.random.normal(k_q, (n_q, FEAT), jnp.float32)
    sl = jnp.arange(n_s, dtype=jnp.int32) % CLASS_NUM   # labels cover 0..CLASS_NUM-1

    params = init_params(k_p)

    score = metric_encoder(s, q, sl, params)
    score = jax.block_until_ready(score)

    assert score.shape == (n_q, n_s), score.shape
    assert bool(jnp.all(jnp.isfinite(score)))
    print("KERNEL_OK")
</pallas_src>

<mosaic_0001>
module attributes {stable_mosaic.version = 11 : i64} {
  func.func @f_psi_kernel(%arg0: memref<8x160xf32, #tpu.memory_space<vmem>>, %arg1: memref<8x160xf32, #tpu.memory_space<vmem>>, %arg2: memref<160x160xf32, #tpu.memory_space<vmem>>, %arg3: memref<2x160xf32, #tpu.memory_space<vmem>>, %arg4: memref<8x160xf32, #tpu.memory_space<vmem>>, %arg5: memref<8x160xf32, #tpu.memory_space<vmem>>, %arg6: memref<8x1xf32, #tpu.memory_space<vmem>>) attributes {dimension_semantics = [], scalar_prefetch = 0 : i64, scratch_operands = 0 : i64, tpu.core_type = #tpu.core_type<tc>} {
    %c0 = arith.constant 0 : index
    %c0_0 = arith.constant 0 : index
    %0 = vector.load %arg0[%c0, %c0_0] : memref<8x160xf32, #tpu.memory_space<vmem>>, vector<8x160xf32>
    %c0_1 = arith.constant 0 : index
    %c0_2 = arith.constant 0 : index
    %1 = vector.load %arg2[%c0_1, %c0_2] : memref<160x160xf32, #tpu.memory_space<vmem>>, vector<160x160xf32>
    %cst = arith.constant dense<0.000000e+00> : vector<8x160xf32>
    %2 = tpu.matmul %0, %1, %cst {dimension_numbers = #tpu.dot_dimension_numbers<[1], [0], [0], [1], [0, 0, 1, 1], [], []>} : vector<8x160xf32>, vector<160x160xf32>, vector<8x160xf32> -> vector<8x160xf32>
    %c0_3 = arith.constant 0 : index
    %c0_4 = arith.constant 0 : index
    %3 = vector.load %arg1[%c0_3, %c0_4] : memref<8x160xf32, #tpu.memory_space<vmem>>, vector<8x160xf32>
    %4 = arith.addf %2, %3 : vector<8x160xf32>
    %cst_5 = arith.constant dense<0.000000e+00> : vector<160xf32>
    %5 = vector.multi_reduction <add>, %4, %cst_5 [0] : vector<8x160xf32> to vector<160xf32>
    %6 = vector.shape_cast %5 : vector<160xf32> to vector<1x160xf32>
    %cst_6 = arith.constant 8.000000e+00 : f32
    %7 = vector.broadcast %cst_6 : f32 to vector<1x160xf32>
    %8 = arith.divf %6, %7 : vector<1x160xf32>
    %9 = vector.broadcast %8 : vector<1x160xf32> to vector<8x160xf32>
    %10 = arith.subf %4, %9 : vector<8x160xf32>
    %11 = arith.mulf %10, %10 : vector<8x160xf32>
    %cst_7 = arith.constant dense<0.000000e+00> : vector<160xf32>
    %12 = vector.multi_reduction <add>, %11, %cst_7 [0] : vector<8x160xf32> to vector<160xf32>
    %13 = vector.shape_cast %12 : vector<160xf32> to vector<1x160xf32>
    %cst_8 = arith.constant 8.000000e+00 : f32
    %14 = vector.broadcast %cst_8 : f32 to vector<1x160xf32>
    %15 = arith.divf %13, %14 : vector<1x160xf32>
    %cst_9 = arith.constant 9.99999974E-6 : f32
    %16 = vector.broadcast %cst_9 : f32 to vector<1x160xf32>
    %17 = arith.addf %15, %16 : vector<1x160xf32>
    %18 = math.rsqrt %17 : vector<1x160xf32>
    %c0_10 = arith.constant 0 : index
    %c0_11 = arith.constant 0 : index
    %19 = vector.load %arg3[%c0_10, %c0_11] : memref<2x160xf32, #tpu.memory_space<vmem>>, vector<1x160xf32>
    %20 = arith.mulf %18, %19 : vector<1x160xf32>
    %21 = vector.broadcast %8 : vector<1x160xf32> to vector<8x160xf32>
    %22 = arith.subf %4, %21 : vector<8x160xf32>
    %23 = vector.broadcast %20 : vector<1x160xf32> to vector<8x160xf32>
    %24 = arith.mulf %22, %23 : vector<8x160xf32>
    %c1 = arith.constant 1 : index
    %c0_12 = arith.constant 0 : index
    %25 = vector.load %arg3[%c1, %c0_12] : memref<2x160xf32, #tpu.memory_space<vmem>>, vector<1x160xf32>
    %26 = vector.broadcast %25 : vector<1x160xf32> to vector<8x160xf32>
    %27 = arith.addf %24, %26 : vector<8x160xf32>
    %cst_13 = arith.constant 0.000000e+00 : f32
    %28 = vector.broadcast %cst_13 : f32 to vector<8x160xf32>
    %29 = arith.subf %28, %27 : vector<8x160xf32>
    %30 = math.exp %29 : vector<8x160xf32>
    %cst_14 = arith.constant 1.000000e+00 : f32
    %31 = vector.broadcast %cst_14 : f32 to vector<8x160xf32>
    %32 = arith.addf %31, %30 : vector<8x160xf32>
    %cst_15 = arith.constant 1.000000e+00 : f32
    %33 = vector.broadcast %cst_15 : f32 to vector<8x160xf32>
    %34 = arith.divf %33, %32 : vector<8x160xf32>
    %c0_16 = arith.constant 0 : index
    %c0_17 = arith.constant 0 : index
    %35 = vector.load %arg4[%c0_16, %c0_17] : memref<8x160xf32, #tpu.memory_space<vmem>>, vector<8x160xf32>
    tpu.vector_store %arg4[%c0_16, %c0_17], %34 {strides = array<i32>} : memref<8x160xf32, #tpu.memory_space<vmem>>, vector<8x160xf32>,
    %cst_18 = arith.constant -2.000000e+00 : f32
    %36 = vector.broadcast %cst_18 : f32 to vector<8x160xf32>
    %37 = arith.mulf %36, %34 : vector<8x160xf32>
    %38 = arith.mulf %37, %0 : vector<8x160xf32>
    %c0_19 = arith.constant 0 : index
    %c0_20 = arith.constant 0 : index
    %39 = vector.load %arg5[%c0_19, %c0_20] : memref<8x160xf32, #tpu.memory_space<vmem>>, vector<8x160xf32>
    tpu.vector_store %arg5[%c0_19, %c0_20], %38 {strides = array<i32>} : memref<8x160xf32, #tpu.memory_space<vmem>>, vector<8x160xf32>,
    %40 = arith.mulf %0, %0 : vector<8x160xf32>
    %41 = arith.mulf %34, %40 : vector<8x160xf32>
    %cst_21 = arith.constant dense<0.000000e+00> : vector<8xf32>
    %42 = vector.multi_reduction <add>, %41, %cst_21 [1] : vector<8x160xf32> to vector<8xf32>
    %43 = vector.shape_cast %42 : vector<8xf32> to vector<8x1xf32>
    %c0_22 = arith.constant 0 : index
    %c0_23 = arith.constant 0 : index
    %44 = vector.load %arg6[%c0_22, %c0_23] : memref<8x1xf32, #tpu.memory_space<vmem>>, vector<8x1xf32>
    tpu.vector_store %arg6[%c0_22, %c0_23], %43 {strides = array<i32>} : memref<8x1xf32, #tpu.memory_space<vmem>>, vector<8x1xf32>,
    return
  }
}

</mosaic_0001>

<llo_original>
// kernel: tpu_custom_call.1
$region0: #{tpu_custom_call.1}
  #allocation0 [shape = 'u32[]', space=smem, size = 0x4, offset = 0x4, fixed_abs, tag = 'smem constant byte address 0x4 - core index']
  #allocation1 [shape = 'u32[72,128]{1,0:T(1,128)}', space=vmem, size = 0x9000, scoped, tag = 'internal scratch']
  %s0 = inlined_call_operand.hbm [shape: f32[8,160], index: 0, kind: input, shape index: {}]
  %s1 = inlined_call_operand.hbm [shape: f32[8,160], index: 1, kind: input, shape index: {}]
  %s2 = inlined_call_operand.hbm [shape: f32[160,160], index: 2, kind: input, shape index: {}]
  %s3 = inlined_call_operand.hbm [shape: f32[2,160], index: 3, kind: input, shape index: {}]
  %s4 = inlined_call_operand.hbm [shape: f32[8,160], index: 4, kind: output, shape index: {0}]
  %s5 = inlined_call_operand.hbm [shape: f32[8,160], index: 5, kind: output, shape index: {1}]
  %s6 = inlined_call_operand.vmem [shape: f32[8,1], index: 6, kind: output, shape index: {2}]
  %7 = xla_tuple %s4, %s5, %s6
  %s8 = sld [smem:[#allocation0]]
  $region58: #{tpu_custom_call.1} parent=0
    _
  %s10 = ssub.s32 1, %s8
  %s11 = scalar_select 0, %s10, %s8
  $region1: #{tpu_custom_call.1} parent=0
    #allocation2 [shape = 'u8[8192]{0}', space=vmem, size = 0x2000, scoped, tag = 'input window, operand 0, single buffered']
    #allocation3 [shape = 's32[1]{0}', space=sflag, size = 0x4, scoped, tag = 'scoped memory for tpu_custom_call.1']
    #allocation4 [shape = 's32[1]{0}', space=sflag, size = 0x4, scoped, tag = 'scoped memory for tpu_custom_call.1']
    #allocation5 [shape = 'u8[8192]{0}', space=vmem, size = 0x2000, scoped, tag = 'input window, operand 1, single buffered']
    #allocation6 [shape = 's32[1]{0}', space=sflag, size = 0x4, scoped, tag = 'scoped memory for tpu_custom_call.1']
    #allocation7 [shape = 'u8[163840]{0}', space=vmem, size = 0x28000, scoped, tag = 'input window, operand 2, single buffered']
    #allocation8 [shape = 'u8[2048]{0}', space=vmem, size = 0x800, scoped, tag = 'input window, operand 3, single buffered']
    #allocation9 [shape = 's32[1]{0}', space=sflag, size = 0x4, scoped, tag = 'scoped memory for tpu_custom_call.1']
    #allocation10 [shape = 'u8[8192]{0}', space=vmem, size = 0x2000, scoped, tag = 'output window, operand 0, single buffered']
    #allocation11 [shape = 'u8[8192]{0}', space=vmem, size = 0x2000, scoped, tag = 'output window, operand 1, single buffered']
    #allocation12 [shape = 's32[1]{0}', space=sflag, size = 0x4, scoped, tag = 'scoped memory for tpu_custom_call.1']
    %12 = vsyncpa [#allocation3], 0
    %13 = vsyncpa [#allocation6], 0
    %14 = vsyncpa [#allocation9], 0
    %15 = vsyncpa [#allocation4], 0
    %16 = vsyncpa [#allocation12], 0
    // Predicated region
    $region2: #{tpu_custom_call.1} parent=1 // pred_check
      _
    $region3: #{tpu_custom_call.1} parent=1 // pred_check_branch
      %18 = sbr.rel (0) target = $region5
    $region4: #{tpu_custom_call.1} parent=1 // pred_region
      %20 = vsyncadd [#allocation3], 0
      %s22 = sshll.u32 %s0, 4
      %s23 = int_to_ptr.hbm [resolvable:$true] %s22
      %s24 = sshll.u32 [#allocation2], 4
      %s25 = int_to_ptr.vmem [resolvable:$true] %s24
      %27 = dma.hbm_to_vmem [thread:$0]  %s23, 256, %s25, [#allocation3]
    $region5: #{tpu_custom_call.1} parent=1 // pred_fallthru
      _
    // Predicated region
    $region6: #{tpu_custom_call.1} parent=1 // pred_check
      _
    $region7: #{tpu_custom_call.1} parent=1 // pred_check_branch
      %29 = sbr.rel (0) target = $region9
    $region8: #{tpu_custom_call.1} parent=1 // pred_region
      %31 = vsyncadd [#allocation6], 0
      %s33 = sshll.u32 %s1, 4
      %s34 = int_to_ptr.hbm [resolvable:$true] %s33
      %s35 = sshll.u32 [#allocation5], 4
      %s36 = int_to_ptr.vmem [resolvable:$true] %s35
      %38 = dma.hbm_to_vmem [thread:$0]  %s34, 256, %s36, [#allocation6]
    $region9: #{tpu_custom_call.1} parent=1 // pred_fallthru
      _
    // Predicated region
    $region10: #{tpu_custom_call.1} parent=1 // pred_check
      _
    $region11: #{tpu_custom_call.1} parent=1 // pred_check_branch
      %40 = sbr.rel (0) target = $region13
    $region12: #{tpu_custom_call.1} parent=1 // pred_region
      %42 = vsyncadd [#allocation6], 0
      %s43 = sshll.u32 %s2, 4
      %s44 = int_to_ptr.hbm [resolvable:$true] %s43
      %s45 = sshll.u32 [#allocation7], 4
      %s46 = int_to_ptr.vmem [resolvable:$true] %s45
      %51 = dma.hbm_to_vmem [thread:$0]  %s44, 5120, %s46, [#allocation6], 256, 256, 16
    $region13: #{tpu_custom_call.1} parent=1 // pred_fallthru
      _
    // Predicated region
    $region14: #{tpu_custom_call.1} parent=1 // pred_check
      _
    $region15: #{tpu_custom_call.1} parent=1 // pred_check_branch
      %53 = sbr.rel (0) target = $region17
    $region16: #{tpu_custom_call.1} parent=1 // pred_region
      %55 = vsyncadd [#allocation9], 0
      %s57 = sshll.u32 %s3, 4
      %s58 = int_to_ptr.hbm [resolvable:$true] %s57
      %s59 = sshll.u32 [#allocation8], 4
      %s60 = int_to_ptr.vmem [resolvable:$true] %s59
      %62 = dma.hbm_to_vmem [thread:$0]  %s58, 64, %s60, [#allocation9]
    $region17: #{tpu_custom_call.1} parent=1 // pred_fallthru
      _
    // Predicated region
    $region18: #{tpu_custom_call.1} parent=1 // pred_check
      _
    $region19: #{tpu_custom_call.1} parent=1 // pred_check_branch
      %64 = sbr.rel (0) target = $region21
    $region20: #{tpu_custom_call.1} parent=1 // pred_region
      %66 = dma.done [#allocation3], 256
    $region21: #{tpu_custom_call.1} parent=1 // pred_fallthru
      _
    // Predicated region
    $region22: #{tpu_custom_call.1} parent=1 // pred_check
      _
    $region23: #{tpu_custom_call.1} parent=1 // pred_check_branch
      %68 = sbr.rel (0) target = $region25
    $region24: #{tpu_custom_call.1} parent=1 // pred_region
      %70 = dma.done [#allocation6], 256
    $region25: #{tpu_custom_call.1} parent=1 // pred_fallthru
      _
    // Predicated region
    $region26: #{tpu_custom_call.1} parent=1 // pred_check
      _
    $region27: #{tpu_custom_call.1} parent=1 // pred_check_branch
      %72 = sbr.rel (0) target = $region29
    $region28: #{tpu_custom_call.1} parent=1 // pred_region
      %74 = dma.done [#allocation6], 5120
    $region29: #{tpu_custom_call.1} parent=1 // pred_fallthru
      _
    // Predicated region
    $region30: #{tpu_custom_call.1} parent=1 // pred_check
      _
    $region31: #{tpu_custom_call.1} parent=1 // pred_check_branch
      %76 = sbr.rel (0) target = $region33
    $region32: #{tpu_custom_call.1} parent=1 // pred_region
      %78 = dma.done [#allocation9], 64
    $region33: #{tpu_custom_call.1} parent=1 // pred_fallthru
      _
    %v79 = vld [vmem:[#allocation2] sm:$0xff]
    %v80 = vld [vmem:[#allocation2 + $0x8] sm:$0xff]
    %v81 = vld [vmem:[#allocation7] sm:$0xff]
    %v82 = vld [vmem:[#allocation7 + $0x8] sm:$0xff]
    %v83 = vld [vmem:[#allocation7 + $0x10] sm:$0xff]
    %v84 = vld [vmem:[#allocation7 + $0x18] sm:$0xff]
    %v85 = vld [vmem:[#allocation7 + $0x20] sm:$0xff]
    %v86 = vld [vmem:[#allocation7 + $0x28] sm:$0xff]
    %v87 = vld [vmem:[#allocation7 + $0x30] sm:$0xff]
    %v88 = vld [vmem:[#allocation7 + $0x38] sm:$0xff]
    %v89 = vld [vmem:[#allocation7 + $0x40] sm:$0xff]
    %v90 = vld [vmem:[#allocation7 + $0x48] sm:$0xff]
    %v91 = vld [vmem:[#allocation7 + $0x50] sm:$0xff]
    %v92 = vld [vmem:[#allocation7 + $0x58] sm:$0xff]
    %v93 = vld [vmem:[#allocation7 + $0x60] sm:$0xff]
    %v94 = vld [vmem:[#allocation7 + $0x68] sm:$0xff]
    %v95 = vld [vmem:[#allocation7 + $0x70] sm:$0xff]
    %v96 = vld [vmem:[#allocation7 + $0x78] sm:$0xff]
    %v97 = vld [vmem:[#allocation7 + $0x80] sm:$0xff]
    %v98 = vld [vmem:[#allocation7 + $0x88] sm:$0xff]
    %v99 = vld [vmem:[#allocation7 + $0x90] sm:$0xff]
    %v100 = vld [vmem:[#allocation7 + $0x98] sm:$0xff]
    %v101 = vld [vmem:[#allocation7 + $0xa0] sm:$0xff]
    %v102 = vld [vmem:[#allocation7 + $0xa8] sm:$0xff]
    %v103 = vld [vmem:[#allocation7 + $0xb0] sm:$0xff]
    %v104 = vld [vmem:[#allocation7 + $0xb8] sm:$0xff]
    %v105 = vld [vmem:[#allocation7 + $0xc0] sm:$0xff]
    %v106 = vld [vmem:[#allocation7 + $0xc8] sm:$0xff]
    %v107 = vld [vmem:[#allocation7 + $0xd0] sm:$0xff]
    %v108 = vld [vmem:[#allocation7 + $0xd8] sm:$0xff]
    %v109 = vld [vmem:[#allocation7 + $0xe0] sm:$0xff]
    %v110 = vld [vmem:[#allocation7 + $0xe8] sm:$0xff]
    %v111 = vld [vmem:[#allocation7 + $0xf0] sm:$0xff]
    %v112 = vld [vmem:[#allocation7 + $0xf8] sm:$0xff]
    %v113 = vld [vmem:[#allocation7 + $0x100] sm:$0xff]
    %v114 = vld [vmem:[#allocation7 + $0x108] sm:$0xff]
    %v115 = vld [vmem:[#allocation7 + $0x110] sm:$0xff]
    %v116 = vld [vmem:[#allocation7 + $0x118] sm:$0xff]
    %v117 = vld [vmem:[#allocation7 + $0x120] sm:$0xff]
    %v118 = vld [vmem:[#allocation7 + $0x128] sm:$0xff]
    %v119 = vld [vmem:[#allocation7 + $0x130] sm:$0xff]
    %v120 = vld [vmem:[#allocation7 + $0x138] sm:$0xff]
    %v121 = vld [vmem:[#allocation5] sm:$0xff]
    %v122 = vld [vmem:[#allocation5 + $0x8] sm:$0xff]
    %vm123 = vcmask 261120
    %v125 = vsel %vm123, %v80, 0
    %127 = vmatpush.msra.mxu0 %v111
    %128 = vmatpush.msra.mxu0 %v109
    %129 = vmatpush.msra.mxu0 %v107
    %130 = vmatpush.msra.mxu0 %v105
    %131 = vmatpush.msra.mxu0 %v103
    %132 = vmatpush.msra.mxu0 %v101
    %133 = vmatpush.msra.mxu0 %v99
    %134 = vmatpush.msra.mxu0 %v97
    %135 = vmatpush.msra.mxu0 %v95
    %136 = vmatpush.msra.mxu0 %v93
    %137 = vmatpush.msra.mxu0 %v91
    %138 = vmatpush.msra.mxu0 %v89
    %139 = vmatpush.msra.mxu0 %v87
    %140 = vmatpush.msra.mxu0 %v85
    %141 = vmatpush.msra.mxu0 %v83
    %142 = vmatpush.msra.mxu0 %v81
    %143 = vmatmul.f32.gmra.mxu0 %v79
    %v144 = vpop.f32.mrf.mxu0
    %v145 = vadd.f32 %v121, %v144
    %146 = vdwg.mxu0
    %147 = vmatpush.msra.mxu0 0.0
    %148 = vmatpush.msra.mxu0 0.0
    %149 = vmatpush.msra.mxu0 0.0
    %150 = vmatpush.msra.mxu0 0.0
    %151 = vmatpush.msra.mxu0 0.0
    %152 = vmatpush.msra.mxu0 0.0
    %153 = vmatpush.msra.mxu0 0.0
    %154 = vmatpush.msra.mxu0 0.0
    %155 = vmatpush.msra.mxu0 0.0
    %156 = vmatpush.msra.mxu0 0.0
    %157 = vmatpush.msra.mxu0 0.0
    %158 = vmatpush.msra.mxu0 0.0
    %159 = vmatpush.msra.mxu0 %v119
    %160 = vmatpush.msra.mxu0 %v117
    %161 = vmatpush.msra.mxu0 %v115
    %162 = vmatpush.msra.mxu0 %v113
    %163 = vmatmul.f32.gmra.mxu0 %v125
    %v164 = vpop.f32.mrf.mxu0
    %v165 = vadd.f32 %v145, %v164
    %166 = vdwg.mxu0
    %167 = vmatpush.msra.mxu0 %v112
    %168 = vmatpush.msra.mxu0 %v110
    %169 = vmatpush.msra.mxu0 %v108
    %170 = vmatpush.msra.mxu0 %v106
    %171 = vmatpush.msra.mxu0 %v104
    %172 = vmatpush.msra.mxu0 %v102
    %173 = vmatpush.msra.mxu0 %v100
    %174 = vmatpush.msra.mxu0 %v98
    %175 = vmatpush.msra.mxu0 %v96
    %176 = vmatpush.msra.mxu0 %v94
    %177 = vmatpush.msra.mxu0 %v92
    %178 = vmatpush.msra.mxu0 %v90
    %179 = vmatpush.msra.mxu0 %v88
    %180 = vmatpush.msra.mxu0 %v86
    %181 = vmatpush.msra.mxu0 %v84
    %182 = vmatpush.msra.mxu0 %v82
    %183 = vmatmul.f32.gmra.mxu0 %v79
    %v184 = vpop.f32.mrf.mxu0
    %v185 = vadd.f32 %v122, %v184
    %186 = vdwg.mxu0
    %187 = vmatpush.msra.mxu0 0.0
    %188 = vmatpush.msra.mxu0 0.0
    %189 = vmatpush.msra.mxu0 0.0
    %190 = vmatpush.msra.mxu0 0.0
    %191 = vmatpush.msra.mxu0 0.0
    %192 = vmatpush.msra.mxu0 0.0
    %193 = vmatpush.msra.mxu0 0.0
    %194 = vmatpush.msra.mxu0 0.0
    %195 = vmatpush.msra.mxu0 0.0
    %196 = vmatpush.msra.mxu0 0.0
    %197 = vmatpush.msra.mxu0 0.0
    %198 = vmatpush.msra.mxu0 0.0
    %199 = vmatpush.msra.mxu0 %v120
    %200 = vmatpush.msra.mxu0 %v118
    %201 = vmatpush.msra.mxu0 %v116
    %202 = vmatpush.msra.mxu0 %v114
    %203 = vmatmul.f32.gmra.mxu0 %v125
    %v204 = vpop.f32.mrf.mxu0
    %v205 = vadd.f32 %v185, %v204
    %206 = vdwg.mxu0
    %v207 = vrot.slane %v165, 4
    %v208 = vadd.f32 %v165, %v207
    %v209 = vrot.slane %v208, 2
    %v210 = vadd.f32 %v208, %v209
    %v211 = vrot.slane %v210, 1
    %v212 = vadd.f32 %v210, %v211
    %v213 = vsel %vm123, %v205, 0.0
    %v214 = vrot.slane %v213, 4
    %v215 = vadd.f32 %v213, %v214
    %v216 = vrot.slane %v215, 2
    %v217 = vadd.f32 %v215, %v216
    %v218 = vrot.slane %v217, 1
    %v219 = vadd.f32 %v217, %v218
    %v220 = vrcp.pop 8.0
    %v221 = vmul.f32 8.0, %v220
    %v222 = vsub.f32 1.0, %v221
    %v223 = vmul.f32 %v220, %v222
    %v224 = vadd.f32 %v220, %v223
    %vm225 = vweird.f32 %v220
    %v226 = vsel %vm225, %v220, %v224
    %v227 = vmul.f32 %v212, %v226
    %v228 = vmul.f32 %v219, %v226
    %v229 = vsub.f32 %v165, %v227
    %v230 = vsub.f32 %v205, %v228
    %v231 = vmul.f32 %v229, %v229
    %v232 = vmul.f32 %v230, %v230
    %v233 = vrot.slane %v231, 4
    %v234 = vadd.f32 %v231, %v233
    %v235 = vrot.slane %v234, 2
    %v236 = vadd.f32 %v234, %v235
    %v237 = vrot.slane %v236, 1
    %v238 = vadd.f32 %v236, %v237
    %v239 = vsel %vm123, %v232, 0.0
    %v240 = vrot.slane %v239, 4
    %v241 = vadd.f32 %v239, %v240
    %v242 = vrot.slane %v241, 2
    %v243 = vadd.f32 %v241, %v242
    %v244 = vrot.slane %v243, 1
    %v245 = vadd.f32 %v243, %v244
    %v246 = vmul.f32 %v238, %v226
    %v247 = vmul.f32 %v245, %v226
    %v248 = vadd.f32 %v246, 1e-05
    %v249 = vadd.f32 %v247, 1e-05
    %v250 = vrsqrt.pop %v248
    %v251 = vmul.f32 %v250, %v248
    %v252 = vmul.f32 %v251, %v250
    %v253 = vmul.f32 0.5, %v252
    %v254 = vsub.f32 1.5, %v253
    %v255 = vmul.f32 %v250, %v254
    %vm256 = vweird.f32 %v248
    %vm257 = vweird.f32 %v250
    %vm258 = vmor %vm256, %vm257
    %v259 = vsel %vm258, %v250, %v255
    %v260 = vrsqrt.pop %v249
    %v261 = vmul.f32 %v260, %v249
    %v262 = vmul.f32 %v261, %v260
    %v263 = vmul.f32 0.5, %v262
    %v264 = vsub.f32 1.5, %v263
    %v265 = vmul.f32 %v260, %v264
    %vm266 = vweird.f32 %v249
    %vm267 = vweird.f32 %v260
    %vm268 = vmor %vm266, %vm267
    %v269 = vsel %vm268, %v260, %v265
    %v270 = vld [vmem:[#allocation8] ss:$2 sm:$0x3]
    %v272 = vperm.slane %v270, 0
    %v273 = vperm.slane %v270, 1
    %v276 = vmul.f32 %v259, %v272
    %v277 = vmul.f32 %v269, %v273
    %v278 = vperm.slane %v276, 0
    %v279 = vperm.slane %v277, 0
    %v280 = vmul.f32 %v229, %v278
    %v281 = vmul.f32 %v230, %v279
    %s282 = scalar_lea.vmem [#allocation8], 1
    %v283 = vld [vmem:[%s282] ss:$2 sm:$0x3]
    %v285 = vperm.slane %v283, 0
    %v286 = vperm.slane %v283, 1
    %v289 = vadd.f32 %v280, %v285
    %v290 = vadd.f32 %v281, %v286
    %v291 = vsub.f32 0.0, %v289
    %v292 = vsub.f32 0.0, %v290
    %v293 = vmul.f32 %v291, 1.442695
    %v294 = vpow.pop %v293
    %v295 = vmul.f32 %v292, 1.442695
    %v296 = vpow.pop %v295
    %v297 = vadd.f32 %v294, 1.0
    %v298 = vadd.f32 %v296, 1.0
    %v299 = vrcp.pop %v297
    %v300 = vmul.f32 %v297, %v299
    %v301 = vsub.f32 1.0, %v300
    %v302 = vmul.f32 %v299, %v301
    %v303 = vadd.f32 %v299, %v302
    %vm304 = vweird.f32 %v297
    %vm305 = vweird.f32 %v299
    %vm306 = vmor %vm304, %vm305
    %v307 = vsel %vm306, %v299, %v303
    %v308 = vand.u32 2147483647, %v297
    %vm309 = vcmp.eq.f32.partialorder %v308, 8.507059e+37
    %v310 = vand.u32 %v297, 2147483648
    %v311 = vor.u32 1.1754944e-38, %v310
    %v312 = vsel %vm309, %v311, %v307
    %v313 = vmul.f32 1.0, %v312
    %v314 = vrcp.pop %v298
    %v315 = vmul.f32 %v298, %v314
    %v316 = vsub.f32 1.0, %v315
    %v317 = vmul.f32 %v314, %v316
    %v318 = vadd.f32 %v314, %v317
    %vm319 = vweird.f32 %v298
    %vm320 = vweird.f32 %v314
    %vm321 = vmor %vm319, %vm320
    %v322 = vsel %vm321, %v314, %v318
    %v323 = vand.u32 2147483647, %v298
    %vm324 = vcmp.eq.f32.partialorder %v323, 8.507059e+37
    %v325 = vand.u32 %v298, 2147483648
    %v326 = vor.u32 1.1754944e-38, %v325
    %v327 = vsel %vm324, %v326, %v322
    %v328 = vmul.f32 1.0, %v327
    %329 = vst [vmem:[#allocation10] sm:$0xff] %v313
    %330 = vst.msk [vmem:[#allocation10 + $0x8] sm:$0xff] %vm123, %v328
    %v331 = vmul.f32 %v313, -2.0
    %v332 = vmul.f32 %v328, -2.0
    %v333 = vmul.f32 %v331, %v79
    %v334 = vmul.f32 %v332, %v80
    %335 = vst [vmem:[#allocation11] sm:$0xff] %v333
    %336 = vst.msk [vmem:[#allocation11 + $0x8] sm:$0xff] %vm123, %v334
    %v337 = vmul.f32 %v79, %v79
    %v338 = vmul.f32 %v80, %v80
    %v339 = vmul.f32 %v313, %v337
    %v340 = vmul.f32 %v328, %v338
    %v341 = vsel %vm123, %v340, 0.0
    %v342 = vadd.f32 %v339, %v341
    %343 = vadd.xlane.f32.xlu0 %v342
    %v344 = vpop.xlane.xlu0 %343
    %vm345 = vcmask 7168
    %346 = vst.msk [vmem:[%s6] sm:$0xff] %vm345, %v344
    // Predicated region
    $region34: #{tpu_custom_call.1} parent=1 // pred_check
      _
    $region35: #{tpu_custom_call.1} parent=1 // pred_check_branch
      %348 = sbr.rel (0) target = $region37
    $region36: #{tpu_custom_call.1} parent=1 // pred_region
      %350 = vsyncadd [#allocation4], 0
      %s352 = sshll.u32 [#allocation10], 4
      %s353 = int_to_ptr.vmem [resolvable:$true] %s352
      %s354 = sshll.u32 %s4, 4
      %s355 = int_to_ptr.hbm [resolvable:$true] %s354
      %357 = dma.vmem_to_hbm [thread:$0]  %s353, 256, %s355, [#allocation4]
    $region37: #{tpu_custom_call.1} parent=1 // pred_fallthru
      _
    // Predicated region
    $region38: #{tpu_custom_call.1} parent=1 // pred_check
      _
    $region39: #{tpu_custom_call.1} parent=1 // pred_check_branch
      %359 = sbr.rel (0) target = $region41
    $region40: #{tpu_custom_call.1} parent=1 // pred_region
      %361 = vsyncadd [#allocation12], 0
      %s363 = sshll.u32 [#allocation11], 4
      %s364 = int_to_ptr.vmem [resolvable:$true] %s363
      %s365 = sshll.u32 %s5, 4
      %s366 = int_to_ptr.hbm [resolvable:$true] %s365
      %368 = dma.vmem_to_hbm [thread:$0]  %s364, 256, %s366, [#allocation12]
    $region41: #{tpu_custom_call.1} parent=1 // pred_fallthru
      _
    // Predicated region
    $region42: #{tpu_custom_call.1} parent=1 // pred_check
      _
    $region43: #{tpu_custom_call.1} parent=1 // pred_check_branch
      %370 = sbr.rel (0) target = $region45
    $region44: #{tpu_custom_call.1} parent=1 // pred_region
      _
    $region45: #{tpu_custom_call.1} parent=1 // pred_fallthru
      _
    // Predicated region
    $region46: #{tpu_custom_call.1} parent=1 // pred_check
      _
    $region47: #{tpu_custom_call.1} parent=1 // pred_check_branch
      %372 = sbr.rel (0) target = $region49
    $region48: #{tpu_custom_call.1} parent=1 // pred_region
      %374 = dma.done [#allocation4], 256
    $region49: #{tpu_custom_call.1} parent=1 // pred_fallthru
      _
    // Predicated region
    $region50: #{tpu_custom_call.1} parent=1 // pred_check
      _
    $region51: #{tpu_custom_call.1} parent=1 // pred_check_branch
      %376 = sbr.rel (0) target = $region53
    $region52: #{tpu_custom_call.1} parent=1 // pred_region
      %378 = dma.done [#allocation12], 256
    $region53: #{tpu_custom_call.1} parent=1 // pred_fallthru
      _
    // Predicated region
    $region54: #{tpu_custom_call.1} parent=1 // pred_check
      _
    $region55: #{tpu_custom_call.1} parent=1 // pred_check_branch
      %380 = sbr.rel (0) target = $region57
    $region56: #{tpu_custom_call.1} parent=1 // pred_region
      _
    $region57: #{tpu_custom_call.1} parent=1 // pred_fallthru
      _
    %381 = vsyncpa [#allocation3], 1
    %382 = vsyncpa [#allocation6], 1
    %383 = vsyncpa [#allocation9], 1
    %384 = vsyncpa [#allocation4], 1
    %385 = vsyncpa [#allocation12], 1

</llo_original>
